<compile_context>
chip_gen: v7x
topology: tpu7x:2x2x1
jax: 0.10.0
libtpu: 0.0.40
codegen_flags: <defaults>
</compile_context>

<pallas_src>
import math

import jax
import jax.numpy as jnp
from jax import lax
from jax.experimental import pallas as pl
from jax.experimental.pallas import tpu as pltpu

LN_EPS = 1e-5
_INV_SQRT2 = 1.0 / math.sqrt(2.0)


def _round_up(x, m):
    return (x + m - 1) // m * m


def _lm_head_kernel(x_ref, wt_ref, bt_ref, g_ref, b_ref, emb_ref, lb_ref,
                    out_ref, h_ref):
    # x_ref:   (TM, H)   token tile (matmul dtype)
    # wt_ref:  (H, H)    transform weight, pre-transposed to (in, out)
    # bt_ref:  (1, H)    transform bias (f32)
    # g_ref:   (1, H)    layernorm gamma (f32)
    # b_ref:   (1, H)    layernorm beta (f32)
    # emb_ref: (H, TV)   embedding weight tile, pre-transposed
    # lb_ref:  (1, TV)   logits bias tile (f32)
    # out_ref: (TM, TV)  logits tile
    # h_ref:   (TM, H)   VMEM scratch: LayerNorm output for the current row tile

    # transform -> GELU -> LayerNorm depends only on the row tile: compute it
    # once (first vocab step of each row tile) and reuse across the vocab axis.
    @pl.when(pl.program_id(1) == 0)
    def _():
        h = jnp.dot(x_ref[...], wt_ref[...], preferred_element_type=jnp.float32)
        h = h + bt_ref[...]
        # exact GELU (torch.nn.GELU default): 0.5*x*(1+erf(x/sqrt(2)))
        h = 0.5 * h * (1.0 + lax.erf(h * _INV_SQRT2))
        # LayerNorm over hidden dim, f32 math
        mean = jnp.mean(h, axis=-1, keepdims=True)
        var = jnp.mean(jnp.square(h - mean), axis=-1, keepdims=True)
        h = (h - mean) * lax.rsqrt(var + LN_EPS)
        h = h * g_ref[...] + b_ref[...]
        h_ref[...] = h.astype(h_ref.dtype)

    # vocab projection on the MXU, f32 accumulation
    logits = jnp.dot(h_ref[...], emb_ref[...], preferred_element_type=jnp.float32)
    logits = logits + lb_ref[...]
    out_ref[...] = logits.astype(out_ref.dtype)


def lm_head_pallas(hidden_states, params, masked_positions=None, *,
                   tile_m=256, tile_v=1024,
                   matmul_dtype=jnp.bfloat16, out_dtype=jnp.float32):
    """hidden_states: [..., H].  Returns logits [..., V] (or [M, V] if
    masked_positions is given, matching the torch module)."""
    wt = params["transform_weight"]      # (H, H)  torch layout (out, in)
    bt = params["transform_bias"]        # (H,)
    gamma = params["ln_gamma"]           # (H,)
    beta = params["ln_beta"]             # (H,)
    emb = params["embedding_weight"]     # (V, H)
    lbias = params["logits_bias"]        # (1, V)

    H = wt.shape[0]
    V = emb.shape[0]

    if masked_positions is not None:
        # Data-dependent row gather (plain JAX, outside the kernel), matching
        # torch: hidden_states.view(-1, H)[masked_positions, :]
        x = hidden_states.reshape(-1, H)[masked_positions, :]
        lead_shape = x.shape[:-1]
    else:
        lead_shape = hidden_states.shape[:-1]
        x = hidden_states.reshape(-1, H)
    N = x.shape[0]

    # Clamp tiles to the (padded) problem size, keep sublane/lane alignment.
    tm = min(tile_m, _round_up(N, 8))
    tv = min(tile_v, _round_up(V, 128))
    n_pad = _round_up(N, tm)
    v_pad = _round_up(V, tv)

    # Pad token rows (sliced off after the call).
    if n_pad != N:
        x = jnp.pad(x, ((0, n_pad - N), (0, 0)))
    x = x.astype(matmul_dtype)

    # Pre-transpose weights once (no in-kernel .T); pad vocab to lane-dense tiles.
    wt_t = wt.T.astype(matmul_dtype)          # (H_in, H_out)
    emb_t = emb.T.astype(matmul_dtype)        # (H, V)
    lb = lbias.reshape(1, V).astype(jnp.float32)
    if v_pad != V:
        emb_t = jnp.pad(emb_t, ((0, 0), (0, v_pad - V)))
        lb = jnp.pad(lb, ((0, 0), (0, v_pad - V)))

    grid = (n_pad // tm, v_pad // tv)

    # Rough VMEM budget: double-buffered pipeline tiles + resident transform
    # weight + h scratch.  Sized so defaults fit v7x's 64 MiB.
    mm_b = jnp.dtype(matmul_dtype).itemsize
    out_b = jnp.dtype(out_dtype).itemsize
    est = (2 * tm * H * mm_b      # x row tiles
           + 2 * H * tv * mm_b    # E^T vocab tiles
           + 2 * tm * tv * out_b  # output tiles
           + 2 * H * H * mm_b     # transform weight (double-buffered)
           + tm * H * mm_b        # h scratch
           + 8 * H * 4 + 2 * tv * 4)
    vmem_limit = max(32 * 1024 * 1024, min(int(est * 1.5) + (4 << 20),
                                           56 * 1024 * 1024))

    out = pl.pallas_call(
        _lm_head_kernel,
        out_shape=jax.ShapeDtypeStruct((n_pad, v_pad), out_dtype),
        grid_spec=pltpu.PrefetchScalarGridSpec(
            num_scalar_prefetch=0,
            grid=grid,
            in_specs=[
                pl.BlockSpec((tm, H), lambda i, j: (i, 0)),   # x row tile
                pl.BlockSpec((H, H), lambda i, j: (0, 0)),    # transform W^T
                pl.BlockSpec((1, H), lambda i, j: (0, 0)),    # transform bias
                pl.BlockSpec((1, H), lambda i, j: (0, 0)),    # ln gamma
                pl.BlockSpec((1, H), lambda i, j: (0, 0)),    # ln beta
                pl.BlockSpec((H, tv), lambda i, j: (0, j)),   # E^T vocab tile
                pl.BlockSpec((1, tv), lambda i, j: (0, j)),   # logits bias tile
            ],
            out_specs=pl.BlockSpec((tm, tv), lambda i, j: (i, j)),
            scratch_shapes=[pltpu.VMEM((tm, H), matmul_dtype)],
        ),
        compiler_params=pltpu.CompilerParams(
            dimension_semantics=("parallel", "arbitrary"),
            vmem_limit_bytes=vmem_limit,
        ),
    )(
        x,
        wt_t,
        bt.reshape(1, H).astype(jnp.float32),
        gamma.reshape(1, H).astype(jnp.float32),
        beta.reshape(1, H).astype(jnp.float32),
        emb_t,
        lb,
    )
    out = out[:N, :V]
    return out.reshape(*lead_shape, V)


def lm_head_reference(hidden_states, params, masked_positions=None):
    """Pure-JAX f32 reference for verification."""
    wt = params["transform_weight"]
    bt = params["transform_bias"]
    gamma = params["ln_gamma"]
    beta = params["ln_beta"]
    emb = params["embedding_weight"]
    lbias = params["logits_bias"]

    if masked_positions is not None:
        hidden_states = hidden_states.reshape(-1, hidden_states.shape[-1])
        hidden_states = hidden_states[masked_positions, :]
    h = hidden_states @ wt.T + bt
    h = 0.5 * h * (1.0 + lax.erf(h * _INV_SQRT2))
    mean = jnp.mean(h, axis=-1, keepdims=True)
    var = jnp.mean(jnp.square(h - mean), axis=-1, keepdims=True)
    h = (h - mean) * lax.rsqrt(var + LN_EPS) * gamma + beta
    return h @ emb.T + lbias


def init_params(key, hidden_size, vocab_size, init_std=0.02):
    k1, k2, k3 = jax.random.split(key, 3)
    return {
        "transform_weight": init_std * jax.random.normal(k1, (hidden_size, hidden_size), jnp.float32),
        "transform_bias": init_std * jax.random.normal(k2, (hidden_size,), jnp.float32),
        "ln_gamma": jnp.ones((hidden_size,), jnp.float32),
        "ln_beta": jnp.zeros((hidden_size,), jnp.float32),
        "embedding_weight": init_std * jax.random.normal(k3, (vocab_size, hidden_size), jnp.float32),
        "logits_bias": jnp.zeros((1, vocab_size), jnp.float32),  # registered buffer, zeros
    }


if __name__ == "__main__":
    # Small shapes consistent with the module (scaled-down config).
    B, S = 2, 8
    HIDDEN = 128     # stands in for config.hidden_size (1280)
    VOCAB = 256      # stands in for config.vocab_size (1000)

    key = jax.random.PRNGKey(0)
    kx, kp = jax.random.split(key)
    params = init_params(kp, HIDDEN, VOCAB)
    hidden_states = jax.random.normal(kx, (B, S, HIDDEN), jnp.float32)

    ref = lm_head_reference(hidden_states, params)

    # f32 MXU path (tight check) — tile_v=128 exercises the 2-D grid / scratch reuse.
    logits_f32 = lm_head_pallas(hidden_states, params, tile_m=128, tile_v=128,
                                matmul_dtype=jnp.float32)
    logits_f32 = jax.block_until_ready(logits_f32)
    assert logits_f32.shape == (B, S, VOCAB)
    assert jnp.allclose(logits_f32, ref, atol=1e-3, rtol=1e-3)

    # bf16 MXU path (production default) — loosened tolerance vs the f32 reference.
    logits_bf16 = lm_head_pallas(hidden_states, params, tile_m=128, tile_v=128,
                                 matmul_dtype=jnp.bfloat16)
    logits_bf16 = jax.block_until_ready(logits_bf16)
    assert logits_bf16.shape == (B, S, VOCAB)
    assert jnp.allclose(logits_bf16, ref, atol=5e-2, rtol=5e-2)

    # masked_positions path (row gather done in plain JAX before the kernel).
    masked_positions = jnp.array([0, 3, 7, 9], dtype=jnp.int32)
    ref_m = lm_head_reference(hidden_states, params, masked_positions)
    logits_m = lm_head_pallas(hidden_states, params, masked_positions,
                              tile_m=128, tile_v=128, matmul_dtype=jnp.float32)
    logits_m = jax.block_until_ready(logits_m)
    assert logits_m.shape == (masked_positions.shape[0], VOCAB)
    assert jnp.allclose(logits_m, ref_m, atol=1e-3, rtol=1e-3)

    print("KERNEL_OK")
</pallas_src>

<mosaic_0001>
module attributes {stable_mosaic.version = 11 : i64} {
  func.func @_lm_head_kernel(%arg0: i32, %arg1: i32, %arg2: memref<16x128xf32, #tpu.memory_space<vmem>>, %arg3: memref<128x128xf32, #tpu.memory_space<vmem>>, %arg4: memref<1x128xf32, #tpu.memory_space<vmem>>, %arg5: memref<1x128xf32, #tpu.memory_space<vmem>>, %arg6: memref<1x128xf32, #tpu.memory_space<vmem>>, %arg7: memref<128x128xf32, #tpu.memory_space<vmem>>, %arg8: memref<1x128xf32, #tpu.memory_space<vmem>>, %arg9: memref<16x128xf32, #tpu.memory_space<vmem>>, %arg10: memref<16x128xf32, #tpu.memory_space<vmem>>) attributes {dimension_semantics = [#tpu.dimension_semantics<parallel>, #tpu.dimension_semantics<arbitrary>], iteration_bounds = array<i64: 1, 2>, scalar_prefetch = 0 : i64, scratch_operands = 1 : i64, tpu.core_type = #tpu.core_type<tc>, window_params = [{transform_indices = @transform_0, window_bounds = array<i64: 16, 128>}, {pipeline_mode = #tpu.pipeline_mode<synchronous>, transform_indices = @transform_1, window_bounds = array<i64: 128, 128>}, {pipeline_mode = #tpu.pipeline_mode<synchronous>, transform_indices = @transform_2, window_bounds = array<i64: 1, 128>}, {pipeline_mode = #tpu.pipeline_mode<synchronous>, transform_indices = @transform_3, window_bounds = array<i64: 1, 128>}, {pipeline_mode = #tpu.pipeline_mode<synchronous>, transform_indices = @transform_4, window_bounds = array<i64: 1, 128>}, {transform_indices = @transform_5, window_bounds = array<i64: 128, 128>}, {transform_indices = @transform_6, window_bounds = array<i64: 1, 128>}, {transform_indices = @transform_7, window_bounds = array<i64: 16, 128>}]} {
    %c0_i32 = arith.constant 0 : i32
    %0 = arith.cmpi eq, %arg1, %c0_i32 : i32
    %1 = arith.extui %0 : i1 to i32
    %c0_i32_0 = arith.constant 0 : i32
    %2 = arith.cmpi ne, %1, %c0_i32_0 : i32
    scf.if %2 {
      %c0_8 = arith.constant 0 : index
      %c0_9 = arith.constant 0 : index
      %10 = vector.load %arg2[%c0_8, %c0_9] : memref<16x128xf32, #tpu.memory_space<vmem>>, vector<16x128xf32>
      %c0_10 = arith.constant 0 : index
      %c0_11 = arith.constant 0 : index
      %11 = vector.load %arg3[%c0_10, %c0_11] : memref<128x128xf32, #tpu.memory_space<vmem>>, vector<128x128xf32>
      %cst_12 = arith.constant dense<0.000000e+00> : vector<16x128xf32>
      %12 = tpu.matmul %10, %11, %cst_12 {dimension_numbers = #tpu.dot_dimension_numbers<[1], [0], [0], [1], [0, 0, 1, 1], [], []>} : vector<16x128xf32>, vector<128x128xf32>, vector<16x128xf32> -> vector<16x128xf32>
      %c0_13 = arith.constant 0 : index
      %c0_14 = arith.constant 0 : index
      %13 = vector.load %arg4[%c0_13, %c0_14] : memref<1x128xf32, #tpu.memory_space<vmem>>, vector<1x128xf32>
      %14 = vector.broadcast %13 : vector<1x128xf32> to vector<16x128xf32>
      %15 = arith.addf %12, %14 : vector<16x128xf32>
      %cst_15 = arith.constant 5.000000e-01 : f32
      %16 = vector.broadcast %cst_15 : f32 to vector<16x128xf32>
      %17 = arith.mulf %16, %15 : vector<16x128xf32>
      %cst_16 = arith.constant 0.707106769 : f32
      %18 = vector.broadcast %cst_16 : f32 to vector<16x128xf32>
      %19 = arith.mulf %15, %18 : vector<16x128xf32>
      %20 = math.erf %19 : vector<16x128xf32>
      %cst_17 = arith.constant 1.000000e+00 : f32
      %21 = vector.broadcast %cst_17 : f32 to vector<16x128xf32>
      %22 = arith.addf %21, %20 : vector<16x128xf32>
      %23 = arith.mulf %17, %22 : vector<16x128xf32>
      %cst_18 = arith.constant dense<0.000000e+00> : vector<16xf32>
      %24 = vector.multi_reduction <add>, %23, %cst_18 [1] : vector<16x128xf32> to vector<16xf32>
      %25 = vector.shape_cast %24 : vector<16xf32> to vector<16x1xf32>
      %cst_19 = arith.constant 1.280000e+02 : f32
      %26 = vector.broadcast %cst_19 : f32 to vector<16x1xf32>
      %27 = arith.divf %25, %26 : vector<16x1xf32>
      %28 = vector.broadcast %27 : vector<16x1xf32> to vector<16x128xf32>
      %29 = arith.subf %23, %28 : vector<16x128xf32>
      %30 = arith.mulf %29, %29 : vector<16x128xf32>
      %cst_20 = arith.constant dense<0.000000e+00> : vector<16xf32>
      %31 = vector.multi_reduction <add>, %30, %cst_20 [1] : vector<16x128xf32> to vector<16xf32>
      %32 = vector.shape_cast %31 : vector<16xf32> to vector<16x1xf32>
      %cst_21 = arith.constant 1.280000e+02 : f32
      %33 = vector.broadcast %cst_21 : f32 to vector<16x1xf32>
      %34 = arith.divf %32, %33 : vector<16x1xf32>
      %35 = vector.broadcast %27 : vector<16x1xf32> to vector<16x128xf32>
      %36 = arith.subf %23, %35 : vector<16x128xf32>
      %cst_22 = arith.constant 9.99999974E-6 : f32
      %37 = vector.broadcast %cst_22 : f32 to vector<16x1xf32>
      %38 = arith.addf %34, %37 : vector<16x1xf32>
      %39 = math.rsqrt %38 : vector<16x1xf32>
      %40 = vector.broadcast %39 : vector<16x1xf32> to vector<16x128xf32>
      %41 = arith.mulf %36, %40 : vector<16x128xf32>
      %c0_23 = arith.constant 0 : index
      %c0_24 = arith.constant 0 : index
      %42 = vector.load %arg5[%c0_23, %c0_24] : memref<1x128xf32, #tpu.memory_space<vmem>>, vector<1x128xf32>
      %43 = vector.broadcast %42 : vector<1x128xf32> to vector<16x128xf32>
      %44 = arith.mulf %41, %43 : vector<16x128xf32>
      %c0_25 = arith.constant 0 : index
      %c0_26 = arith.constant 0 : index
      %45 = vector.load %arg6[%c0_25, %c0_26] : memref<1x128xf32, #tpu.memory_space<vmem>>, vector<1x128xf32>
      %46 = vector.broadcast %45 : vector<1x128xf32> to vector<16x128xf32>
      %47 = arith.addf %44, %46 : vector<16x128xf32>
      %c0_27 = arith.constant 0 : index
      %c0_28 = arith.constant 0 : index
      %48 = vector.load %arg10[%c0_27, %c0_28] : memref<16x128xf32, #tpu.memory_space<vmem>>, vector<16x128xf32>
      tpu.vector_store %arg10[%c0_27, %c0_28], %47 {strides = array<i32>} : memref<16x128xf32, #tpu.memory_space<vmem>>, vector<16x128xf32>,
    } else {
    }
    %c0 = arith.constant 0 : index
    %c0_1 = arith.constant 0 : index
    %3 = vector.load %arg10[%c0, %c0_1] : memref<16x128xf32, #tpu.memory_space<vmem>>, vector<16x128xf32>
    %c0_2 = arith.constant 0 : index
    %c0_3 = arith.constant 0 : index
    %4 = vector.load %arg7[%c0_2, %c0_3] : memref<128x128xf32, #tpu.memory_space<vmem>>, vector<128x128xf32>
    %cst = arith.constant dense<0.000000e+00> : vector<16x128xf32>
    %5 = tpu.matmul %3, %4, %cst {dimension_numbers = #tpu.dot_dimension_numbers<[1], [0], [0], [1], [0, 0, 1, 1], [], []>} : vector<16x128xf32>, vector<128x128xf32>, vector<16x128xf32> -> vector<16x128xf32>
    %c0_4 = arith.constant 0 : index
    %c0_5 = arith.constant 0 : index
    %6 = vector.load %arg8[%c0_4, %c0_5] : memref<1x128xf32, #tpu.memory_space<vmem>>, vector<1x128xf32>
    %7 = vector.broadcast %6 : vector<1x128xf32> to vector<16x128xf32>
    %8 = arith.addf %5, %7 : vector<16x128xf32>
    %c0_6 = arith.constant 0 : index
    %c0_7 = arith.constant 0 : index
    %9 = vector.load %arg9[%c0_6, %c0_7] : memref<16x128xf32, #tpu.memory_space<vmem>>, vector<16x128xf32>
    tpu.vector_store %arg9[%c0_6, %c0_7], %8 {strides = array<i32>} : memref<16x128xf32, #tpu.memory_space<vmem>>, vector<16x128xf32>,
    return
  }
  func.func @transform_0(%arg0: i32, %arg1: i32) -> (i32, i32) {
    %c0_i32 = arith.constant 0 : i32
    %c0_i32_0 = arith.constant 0 : i32
    return %arg0, %c0_i32 : i32, i32
  }
  func.func @transform_1(%arg0: i32, %arg1: i32) -> (i32, i32) {
    %c0_i32 = arith.constant 0 : i32
    %c0_i32_0 = arith.constant 0 : i32
    %c0_i32_1 = arith.constant 0 : i32
    return %c0_i32, %c0_i32_0 : i32, i32
  }
  func.func @transform_2(%arg0: i32, %arg1: i32) -> (i32, i32) {
    %c0_i32 = arith.constant 0 : i32
    %c0_i32_0 = arith.constant 0 : i32
    %c0_i32_1 = arith.constant 0 : i32
    return %c0_i32, %c0_i32_0 : i32, i32
  }
  func.func @transform_3(%arg0: i32, %arg1: i32) -> (i32, i32) {
    %c0_i32 = arith.constant 0 : i32
    %c0_i32_0 = arith.constant 0 : i32
    %c0_i32_1 = arith.constant 0 : i32
    return %c0_i32, %c0_i32_0 : i32, i32
  }
  func.func @transform_4(%arg0: i32, %arg1: i32) -> (i32, i32) {
    %c0_i32 = arith.constant 0 : i32
    %c0_i32_0 = arith.constant 0 : i32
    %c0_i32_1 = arith.constant 0 : i32
    return %c0_i32, %c0_i32_0 : i32, i32
  }
  func.func @transform_5(%arg0: i32, %arg1: i32) -> (i32, i32) {
    %c0_i32 = arith.constant 0 : i32
    %c0_i32_0 = arith.constant 0 : i32
    return %c0_i32, %arg1 : i32, i32
  }
  func.func @transform_6(%arg0: i32, %arg1: i32) -> (i32, i32) {
    %c0_i32 = arith.constant 0 : i32
    %c0_i32_0 = arith.constant 0 : i32
    return %c0_i32, %arg1 : i32, i32
  }
  func.func @transform_7(%arg0: i32, %arg1: i32) -> (i32, i32) {
    %c0_i32 = arith.constant 0 : i32
    return %arg0, %arg1 : i32, i32
  }
}

</mosaic_0001>

<llo_original>
// kernel: tpu_custom_call.1
$region0: #{tpu_custom_call.1}
  #allocation0 [shape = 'u32[]', space=smem, size = 0x4, offset = 0x4, fixed_abs, tag = 'smem constant byte address 0x4 - core index']
  #allocation1 [shape = 'u32[144,128]{1,0:T(1,128)}', space=vmem, size = 0x12000, scoped, tag = 'internal scratch']
  #allocation2 [shape = 'f32[16,128]{1,0:T(8,128)}', space=vmem, size = 0x2000, scoped, tag = 'scratch operand']
  %s0 = inlined_call_operand.hbm [shape: f32[16,128], index: 0, kind: input, shape index: {}]
  %s1 = inlined_call_operand.hbm [shape: f32[128,128], index: 1, kind: input, shape index: {}]
  %s2 = inlined_call_operand.vmem [shape: f32[1,128], index: 2, kind: input, shape index: {}]
  %s3 = inlined_call_operand.vmem [shape: f32[1,128], index: 3, kind: input, shape index: {}]
  %s4 = inlined_call_operand.vmem [shape: f32[1,128], index: 4, kind: input, shape index: {}]
  %s5 = inlined_call_operand.hbm [shape: f32[128,256], index: 5, kind: input, shape index: {}]
  %s6 = inlined_call_operand.vmem [shape: f32[1,256], index: 6, kind: input, shape index: {}]
  %s7 = inlined_call_operand.hbm [shape: f32[16,256], index: 7, kind: output, shape index: {}]
  %s8 = sld [smem:[#allocation0]]
  $region77: #{tpu_custom_call.1} parent=0
    _
  %s10 = ssub.s32 1, %s8
  %s11 = scalar_select 0, %s10, %s8
  $region1: #{tpu_custom_call.1} parent=0
    #allocation3 [shape = 'u8[8192]{0}', space=vmem, size = 0x2000, scoped, tag = 'input window, operand 0, single buffered']
    #allocation4 [shape = 's32[2]{0}', space=sflag, size = 0x8, scoped, tag = 'scoped memory for tpu_custom_call.1']
    #allocation5 [shape = 's32[2]{0}', space=sflag, size = 0x8, scoped, tag = 'scoped memory for tpu_custom_call.1']
    #allocation6 [shape = 'u8[65536]{0}', space=vmem, size = 0x10000, scoped, tag = 'input window, operand 1, single buffered']
    #allocation7 [shape = 's32[1]{0}', space=sflag, size = 0x4, scoped, tag = 'scoped memory for tpu_custom_call.1']
    #allocation8 [shape = 'u8[131072]{0}', space=vmem, size = 0x20000, scoped, tag = 'input window, operand 5']
    #allocation9 [shape = 'u8[16384]{0}', space=vmem, size = 0x4000, scoped, tag = 'output window, operand 0']
    %12 = vsyncpa [#allocation4], 0
    %13 = vsyncpa [#allocation7], 0
    %14 = vsyncpa [#allocation5], 0
    %s15 = scalar_lea.sflag [#allocation5], 1
    %16 = vsyncpa %s15, 0
    loop: start=0, step=1, limit=4
    $region2: #{tpu_custom_call.1} parent=1 // loop_pre_header
      _
    $region3: #{tpu_custom_call.1} parent=1 // loop_header
      %s18 = sphi 0, %s22
      %p19 = scmp.ge.s32.totalorder %s18, 4
      %s25 = sphi 0, %s37
      %s26 = sphi 0, %s33
      %s27 = sphi 0, %s25
      %s28 = sphi 0, %s26
      %s29 = sphi 0, %s27
      %s30 = sphi 0, %s28
      %s40 = sphi 0, %s42
      %s43 = sphi 0, %s40
      %s44 = sphi 0, %s43
      %s60 = sphi 0, %s44
      %s64 = sphi 0, %s64
      %s66 = sphi 0, %s64
      %s67 = sphi 0, %s66
      %s81 = sphi 0, %s67
      %s85 = sphi 0, %s85
      %s87 = sphi 0, %s85
      %s88 = sphi 0, %s87
      %s102 = sphi 0, %s88
      %s106 = sphi 0, %s106
      %s108 = sphi 0, %s106
      %s109 = sphi 0, %s108
      %s123 = sphi 0, %s109
      %s127 = sphi 0, %s127
      %s129 = sphi 0, %s127
      %s130 = sphi 0, %s129
      %s144 = sphi 0, %s130
      %s150 = sphi 0, %s152
      %s153 = sphi 0, %s150
      %s154 = sphi 0, %s153
      %s170 = sphi 0, %s154
      %s176 = sphi 0, %s178
      %s179 = sphi 0, %s176
      %s180 = sphi 0, %s179
      %s196 = sphi 0, %s180
      %s204 = sphi 0, %s206
      %s207 = sphi 0, %s204
      %s208 = sphi 0, %s207
      %s224 = sphi 0, %s208
    $region4: #{tpu_custom_call.1} parent=1 // loop_header_branch
      %21 = sbr.rel (%p19) target = $region8
    $region5: #{tpu_custom_call.1} parent=1 // loop_body
      %s23 = ssub.s32 %s18, 1
      %s24 = ssub.s32 %s18, 2
      %s31 = sadd.s32 1, %s26
      %p32 = scmp.ge.s32.totalorder %s31, 2
      %s33 = scalar_select %p32, 0, %s31
      %s34 = sadd.s32 1, %s25
      %s35 = scalar_select %p32, %s34, %s25
      %p36 = scmp.ge.s32.totalorder %s35, 1
      %s37 = scalar_select %p36, 0, %s35
      %s38 = ssub.s32 %s25, %s37
      %p39 = scmp.eq.s32.totalorder %s38, 0
      %s41 = sadd.s32 %s40, 1
      %s42 = scalar_select %p39, %s40, %s41
      %p45 = pneg %p39
      %p46 = scmp.eq.s32.totalorder %s18, 1
      %p47 = por %p45, %p46
      %p48 = scmp.ne.s32.totalorder %s40, %s43
      %p49 = scmp.eq.s32.totalorder %s18, 0
      %p50 = por %p48, %p49
      %p51 = scmp.ne.s32.totalorder %s40, %s43
      %p52 = scmp.eq.s32.totalorder %s23, 1
      %p53 = por %p51, %p52
      %p54 = scmp.ne.s32.totalorder %s43, %s44
      %p55 = scmp.eq.s32.totalorder %s23, 0
      %p56 = por %p54, %p55
      %p57 = scmp.ne.s32.totalorder %s43, %s44
      %p58 = scmp.eq.s32.totalorder %s24, 1
      %p59 = por %p57, %p58
      %p61 = scmp.ne.s32.totalorder %s44, %s60
      %p62 = scmp.eq.s32.totalorder %s24, 0
      %p63 = por %p61, %p62
      %s65 = sadd.s32 %s64, 1
      %p68 = scmp.eq.s32.totalorder %s18, 1
      %p69 = scmp.ne.s32.totalorder %s64, %s66
      %p70 = scmp.eq.s32.totalorder %s18, 0
      %p71 = por %p69, %p70
      %p72 = scmp.ne.s32.totalorder %s64, %s66
      %p73 = scmp.eq.s32.totalorder %s23, 1
      %p74 = por %p72, %p73
      %p75 = scmp.ne.s32.totalorder %s66, %s67
      %p76 = scmp.eq.s32.totalorder %s23, 0
      %p77 = por %p75, %p76
      %p78 = scmp.ne.s32.totalorder %s66, %s67
      %p79 = scmp.eq.s32.totalorder %s24, 1
      %p80 = por %p78, %p79
      %p82 = scmp.ne.s32.totalorder %s67, %s81
      %p83 = scmp.eq.s32.totalorder %s24, 0
      %p84 = por %p82, %p83
      %s86 = sadd.s32 %s85, 1
      %p89 = scmp.eq.s32.totalorder %s18, 1
      %p90 = scmp.ne.s32.totalorder %s85, %s87
      %p91 = scmp.eq.s32.totalorder %s18, 0
      %p92 = por %p90, %p91
      %p93 = scmp.ne.s32.totalorder %s85, %s87
      %p94 = scmp.eq.s32.totalorder %s23, 1
      %p95 = por %p93, %p94
      %p96 = scmp.ne.s32.totalorder %s87, %s88
      %p97 = scmp.eq.s32.totalorder %s23, 0
      %p98 = por %p96, %p97
      %p99 = scmp.ne.s32.totalorder %s87, %s88
      %p100 = scmp.eq.s32.totalorder %s24, 1
      %p101 = por %p99, %p100
      %p103 = scmp.ne.s32.totalorder %s88, %s102
      %p104 = scmp.eq.s32.totalorder %s24, 0
      %p105 = por %p103, %p104
      %s107 = sadd.s32 %s106, 1
      %p110 = scmp.eq.s32.totalorder %s18, 1
      %p111 = scmp.ne.s32.totalorder %s106, %s108
      %p112 = scmp.eq.s32.totalorder %s18, 0
      %p113 = por %p111, %p112
      %p114 = scmp.ne.s32.totalorder %s106, %s108
      %p115 = scmp.eq.s32.totalorder %s23, 1
      %p116 = por %p114, %p115
      %p117 = scmp.ne.s32.totalorder %s108, %s109
      %p118 = scmp.eq.s32.totalorder %s23, 0
      %p119 = por %p117, %p118
      %p120 = scmp.ne.s32.totalorder %s108, %s109
      %p121 = scmp.eq.s32.totalorder %s24, 1
      %p122 = por %p120, %p121
      %p124 = scmp.ne.s32.totalorder %s109, %s123
      %p125 = scmp.eq.s32.totalorder %s24, 0
      %p126 = por %p124, %p125
      %s128 = sadd.s32 %s127, 1
      %p131 = scmp.eq.s32.totalorder %s18, 1
      %p132 = scmp.ne.s32.totalorder %s127, %s129
      %p133 = scmp.eq.s32.totalorder %s18, 0
      %p134 = por %p132, %p133
      %p135 = scmp.ne.s32.totalorder %s127, %s129
      %p136 = scmp.eq.s32.totalorder %s23, 1
      %p137 = por %p135, %p136
      %p138 = scmp.ne.s32.totalorder %s129, %s130
      %p139 = scmp.eq.s32.totalorder %s23, 0
      %p140 = por %p138, %p139
      %p141 = scmp.ne.s32.totalorder %s129, %s130
      %p142 = scmp.eq.s32.totalorder %s24, 1
      %p143 = por %p141, %p142
      %p145 = scmp.ne.s32.totalorder %s130, %s144
      %p146 = scmp.eq.s32.totalorder %s24, 0
      %p147 = por %p145, %p146
      %s148 = ssub.s32 %s26, %s33
      %p149 = scmp.eq.s32.totalorder %s148, 0
      %s151 = sadd.s32 %s150, 1
      %s152 = scalar_select %p149, %s150, %s151
      %p155 = pneg %p149
      %p156 = scmp.eq.s32.totalorder %s18, 1
      %p157 = por %p155, %p156
      %p158 = scmp.ne.s32.totalorder %s150, %s153
      %p159 = scmp.eq.s32.totalorder %s18, 0
      %p160 = por %p158, %p159
      %p161 = scmp.ne.s32.totalorder %s150, %s153
      %p162 = scmp.eq.s32.totalorder %s23, 1
      %p163 = por %p161, %p162
      %p164 = scmp.ne.s32.totalorder %s153, %s154
      %p165 = scmp.eq.s32.totalorder %s23, 0
      %p166 = por %p164, %p165
      %p167 = scmp.ne.s32.totalorder %s153, %s154
      %p168 = scmp.eq.s32.totalorder %s24, 1
      %p169 = por %p167, %p168
      %p171 = scmp.ne.s32.totalorder %s154, %s170
      %p172 = scmp.eq.s32.totalorder %s24, 0
      %p173 = por %p171, %p172
      %s174 = ssub.s32 %s26, %s33
      %p175 = scmp.eq.s32.totalorder %s174, 0
      %s177 = sadd.s32 %s176, 1
      %s178 = scalar_select %p175, %s176, %s177
      %p181 = pneg %p175
      %p182 = scmp.eq.s32.totalorder %s18, 1
      %p183 = por %p181, %p182
      %p184 = scmp.ne.s32.totalorder %s176, %s179
      %p185 = scmp.eq.s32.totalorder %s18, 0
      %p186 = por %p184, %p185
      %p187 = scmp.ne.s32.totalorder %s176, %s179
      %p188 = scmp.eq.s32.totalorder %s23, 1
      %p189 = por %p187, %p188
      %p190 = scmp.ne.s32.totalorder %s179, %s180
      %p191 = scmp.eq.s32.totalorder %s23, 0
      %p192 = por %p190, %p191
      %p193 = scmp.ne.s32.totalorder %s179, %s180
      %p194 = scmp.eq.s32.totalorder %s24, 1
      %p195 = por %p193, %p194
      %p197 = scmp.ne.s32.totalorder %s180, %s196
      %p198 = scmp.eq.s32.totalorder %s24, 0
      %p199 = por %p197, %p198
      %s200 = ssub.s32 %s25, %s37
      %s201 = ssub.s32 %s26, %s33
      %s202 = sor.u32 %s200, %s201
      %p203 = scmp.eq.s32.totalorder %s202, 0
      %s205 = sadd.s32 %s204, 1
      %s206 = scalar_select %p203, %s204, %s205
      %p209 = pneg %p203
      %p210 = scmp.eq.s32.totalorder %s18, 1
      %p211 = por %p209, %p210
      %p212 = scmp.ne.s32.totalorder %s204, %s207
      %p213 = scmp.eq.s32.totalorder %s18, 0
      %p214 = por %p212, %p213
      %p215 = scmp.ne.s32.totalorder %s204, %s207
      %p216 = scmp.eq.s32.totalorder %s23, 1
      %p217 = por %p215, %p216
      %p218 = scmp.ne.s32.totalorder %s207, %s208
      %p219 = scmp.eq.s32.totalorder %s23, 0
      %p220 = por %p218, %p219
      %p221 = scmp.ne.s32.totalorder %s207, %s208
      %p222 = scmp.eq.s32.totalorder %s24, 1
      %p223 = por %p221, %p222
      %p225 = scmp.ne.s32.totalorder %s208, %s224
      %p226 = scmp.eq.s32.totalorder %s24, 0
      %p227 = por %p225, %p226
      %p228 = scmp.le.s32.totalorder 1, %s18
      %p229 = scmp.lt.s32.totalorder %s18, 3
      %p230 = pnand %p228, %p229
      %p231 = pneg %p230
      // Predicated region
      $region9: #{tpu_custom_call.1} parent=5 // pred_check
        _
      $region10: #{tpu_custom_call.1} parent=5 // pred_check_branch
        %233 = sbr.rel (%p230) target = $region12
      $region11: #{tpu_custom_call.1} parent=5 // pred_region
        %s234 = ssub.s32 %s18, 1
        // Predicated region
        $region13: #{tpu_custom_call.1} parent=11 // pred_check
          %p235 = pneg %p56
        $region14: #{tpu_custom_call.1} parent=11 // pred_check_branch
          %237 = sbr.rel (%p235) target = $region16
        $region15: #{tpu_custom_call.1} parent=11 // pred_region
          %s238 = smul.u32 2, %s27
          %s240 = ssub.s32 256, 256
          %241 = vsyncadd [#allocation4], %s240
          %s242 = smul.addr %s238, 128
          %s243 = scalar_lea.hbm %s0, %s242
          %s244 = sshll.u32 [#allocation3], 4
          %s245 = int_to_ptr.vmem [resolvable:$true] %s244
          %250 = dma.hbm_to_vmem [thread:$0]  %s243, 256, %s245, [#allocation4], 128, 128, 8
        $region16: #{tpu_custom_call.1} parent=11 // pred_fallthru
          _
        // Predicated region
        $region17: #{tpu_custom_call.1} parent=11 // pred_check
          %p251 = pneg %p77
        $region18: #{tpu_custom_call.1} parent=11 // pred_check_branch
          %253 = sbr.rel (%p251) target = $region20
        $region19: #{tpu_custom_call.1} parent=11 // pred_region
          %s255 = ssub.s32 2048, 2048
          %256 = vsyncadd [#allocation7], %s255
          %s257 = sshll.u32 [#allocation6], 4
          %s258 = int_to_ptr.vmem [resolvable:$true] %s257
          %263 = dma.hbm_to_vmem [thread:$0]  %s1, 2048, %s258, [#allocation7], 128, 128, 8
        $region20: #{tpu_custom_call.1} parent=11 // pred_fallthru
          _
        // Predicated region
        $region21: #{tpu_custom_call.1} parent=11 // pred_check
          %p264 = pneg %p98
        $region22: #{tpu_custom_call.1} parent=11 // pred_check_branch
          %266 = sbr.rel (%p264) target = $region24
        $region23: #{tpu_custom_call.1} parent=11 // pred_region
          _
        $region24: #{tpu_custom_call.1} parent=11 // pred_fallthru
          _
        // Predicated region
        $region25: #{tpu_custom_call.1} parent=11 // pred_check
          %p267 = pneg %p119
        $region26: #{tpu_custom_call.1} parent=11 // pred_check_branch
          %269 = sbr.rel (%p267) target = $region28
        $region27: #{tpu_custom_call.1} parent=11 // pred_region
          _
        $region28: #{tpu_custom_call.1} parent=11 // pred_fallthru
          _
        // Predicated region
        $region29: #{tpu_custom_call.1} parent=11 // pred_check
          %p270 = pneg %p140
        $region30: #{tpu_custom_call.1} parent=11 // pred_check_branch
          %272 = sbr.rel (%p270) target = $region32
        $region31: #{tpu_custom_call.1} parent=11 // pred_region
          _
        $region32: #{tpu_custom_call.1} parent=11 // pred_fallthru
          _
      $region12: #{tpu_custom_call.1} parent=5 // pred_fallthru
        _
      %p273 = scmp.lt.s32.totalorder %s18, 2
      // Predicated region
      $region33: #{tpu_custom_call.1} parent=5 // pred_check
        %p274 = pneg %p273
      $region34: #{tpu_custom_call.1} parent=5 // pred_check_branch
        %276 = sbr.rel (%p274) target = $region36
      $region35: #{tpu_custom_call.1} parent=5 // pred_region
        // Predicated region
        $region37: #{tpu_custom_call.1} parent=35 // pred_check
          %p277 = pneg %p160
        $region38: #{tpu_custom_call.1} parent=35 // pred_check_branch
          %279 = sbr.rel (%p277) target = $region40
        $region39: #{tpu_custom_call.1} parent=35 // pred_region
          %s280 = sand.u32 %s18, 1
          %s281 = scalar_lea.sflag [#allocation4], %s280
          %s282 = sand.u32 %s150, 1
          %s283 = smul.addr %s282, 128
          %s284 = scalar_lea.vmem [#allocation8], %s283
          %s286 = ssub.s32 2048, 2048
          %287 = vsyncadd %s281, %s286
          %s288 = smul.addr %s26, 128
          %s289 = scalar_lea.hbm %s5, %s288
          %s290 = sshll.u32 %s284, 4
          %s291 = int_to_ptr.vmem [resolvable:$true] %s290
          %296 = dma.hbm_to_vmem [thread:$0]  %s289, 2048, %s291, %s281, 256, 128, 8
        $region40: #{tpu_custom_call.1} parent=35 // pred_fallthru
          _
        // Predicated region
        $region41: #{tpu_custom_call.1} parent=35 // pred_check
          %p297 = pneg %p186
        $region42: #{tpu_custom_call.1} parent=35 // pred_check_branch
          %299 = sbr.rel (%p297) target = $region44
        $region43: #{tpu_custom_call.1} parent=35 // pred_region
          %p300 = scmp.lt.s32.totalorder %s26, 1
          %s301 = scalar_select %p300, %s26, 1
          %s302 = scalar_lea.vmem %s6, %s301
        $region44: #{tpu_custom_call.1} parent=35 // pred_fallthru
          _
      $region36: #{tpu_custom_call.1} parent=5 // pred_fallthru
        _
      %p303 = scmp.le.s32.totalorder 1, %s18
      %p304 = scmp.lt.s32.totalorder %s18, 3
      %p305 = pnand %p303, %p304
      %p306 = pneg %p305
      // Predicated region
      $region45: #{tpu_custom_call.1} parent=5 // pred_check
        _
      $region46: #{tpu_custom_call.1} parent=5 // pred_check_branch
        %308 = sbr.rel (%p305) target = $region48
      $region47: #{tpu_custom_call.1} parent=5 // pred_region
        %s309 = ssub.s32 %s18, 1
        // Predicated region
        $region49: #{tpu_custom_call.1} parent=47 // pred_check
          %p310 = pneg %p56
        $region50: #{tpu_custom_call.1} parent=47 // pred_check_branch
          %312 = sbr.rel (%p310) target = $region52
        $region51: #{tpu_custom_call.1} parent=47 // pred_region
          %313 = dma.done [#allocation4], 256
        $region52: #{tpu_custom_call.1} parent=47 // pred_fallthru
          _
        // Predicated region
        $region53: #{tpu_custom_call.1} parent=47 // pred_check
          %p314 = pneg %p77
        $region54: #{tpu_custom_call.1} parent=47 // pred_check_branch
          %316 = sbr.rel (%p314) target = $region56
        $region55: #{tpu_custom_call.1} parent=47 // pred_region
          %317 = dma.done [#allocation7], 2048
        $region56: #{tpu_custom_call.1} parent=47 // pred_fallthru
          _
        %s318 = sand.u32 %s23, 1
        %s319 = scalar_lea.sflag [#allocation4], %s318
        %s320 = sand.u32 %s153, 1
        %s321 = smul.addr %s320, 128
        %s322 = scalar_lea.vmem [#allocation8], %s321
        // Predicated region
        $region57: #{tpu_custom_call.1} parent=47 // pred_check
          %p323 = pneg %p166
        $region58: #{tpu_custom_call.1} parent=47 // pred_check_branch
          %325 = sbr.rel (%p323) target = $region60
        $region59: #{tpu_custom_call.1} parent=47 // pred_region
          %326 = dma.done %s319, 2048
        $region60: #{tpu_custom_call.1} parent=47 // pred_fallthru
          _
        %p327 = pneg %p56
        %p328 = pneg %p53
        %p329 = pneg %p77
        %p330 = pneg %p74
        %p331 = pneg %p98
        %p332 = pneg %p95
        %p333 = pneg %p119
        %p334 = pneg %p116
        %p335 = pneg %p140
        %p336 = pneg %p137
        %s337 = sand.u32 %s23, 1
        %s338 = scalar_lea.sflag [#allocation4], %s337
        %s339 = sand.u32 %s153, 1
        %s340 = smul.addr %s339, 128
        %s341 = scalar_lea.vmem [#allocation8], %s340
        %p342 = pneg %p166
        %p343 = pneg %p163
        %p344 = scmp.lt.s32.totalorder %s28, 1
        %s345 = scalar_select %p344, %s28, 1
        %s346 = scalar_lea.vmem %s6, %s345
        %p347 = pneg %p192
        %p348 = pneg %p189
        %p349 = pneg %p220
        %p350 = pneg %p217
        %s351 = sand.u32 %s207, 1
        %s352 = scalar_lea.sflag [#allocation5], %s351
        %s353 = sand.u32 %s207, 1
        %s354 = smul.addr %s353, 16
        %s355 = scalar_lea.vmem [#allocation9], %s354
        %s356 = smul.u32 2, %s27
        %p357 = scmp.lt.s32.totalorder %s28, 1
        %s358 = scalar_select %p357, %s28, 1
        %s359 = scalar_lea.vmem %s6, %s358
        %s360 = smul.u32 2, %s27
        %p361 = scmp.eq.s32.totalorder %s28, 0
        // Predicated region
        $region61: #{tpu_custom_call.1} parent=47 // pred_check
          %p362 = pneg %p361
        $region62: #{tpu_custom_call.1} parent=47 // pred_check_branch
          %364 = sbr.rel (%p362) target = $region64
        $region63: #{tpu_custom_call.1} parent=47 // pred_region
          %v365 = vld [vmem:[#allocation3] sm:$0xff]
          %v366 = vld [vmem:[#allocation3 + $0x8] sm:$0xff]
          %v367 = vld [vmem:[#allocation6] sm:$0xff]
          %v368 = vld [vmem:[#allocation6 + $0x8] sm:$0xff]
          %v369 = vld [vmem:[#allocation6 + $0x10] sm:$0xff]
          %v370 = vld [vmem:[#allocation6 + $0x18] sm:$0xff]
          %v371 = vld [vmem:[#allocation6 + $0x20] sm:$0xff]
          %v372 = vld [vmem:[#allocation6 + $0x28] sm:$0xff]
          %v373 = vld [vmem:[#allocation6 + $0x30] sm:$0xff]
          %v374 = vld [vmem:[#allocation6 + $0x38] sm:$0xff]
          %v375 = vld [vmem:[#allocation6 + $0x40] sm:$0xff]
          %v376 = vld [vmem:[#allocation6 + $0x48] sm:$0xff]
          %v377 = vld [vmem:[#allocation6 + $0x50] sm:$0xff]
          %v378 = vld [vmem:[#allocation6 + $0x58] sm:$0xff]
          %v379 = vld [vmem:[#allocation6 + $0x60] sm:$0xff]
          %v380 = vld [vmem:[#allocation6 + $0x68] sm:$0xff]
          %v381 = vld [vmem:[#allocation6 + $0x70] sm:$0xff]
          %v382 = vld [vmem:[#allocation6 + $0x78] sm:$0xff]
          %v383 = vld [vmem:[%s2] sm:$0x1]
          %v385 = vlaneseq
          %v386 = vshrl.u32 %v385, 7
          %v387 = vsub.s32 0, %v386
          %v388 = vrot.slane %v383, %v387
          %390 = vmatprep.subr.mxu0 0.0
          %391 = vmatpush1.msra.mxu0 %v367
          %392 = vmatprep.subr.mxu0 0.0
          %393 = vmatpush1.msra.mxu0 %v368
          %394 = vmatprep.subr.mxu0 0.0
          %395 = vmatpush1.msra.mxu0 %v369
          %396 = vmatprep.subr.mxu0 0.0
          %397 = vmatpush1.msra.mxu0 %v370
          %398 = vmatprep.subr.mxu0 0.0
          %399 = vmatpush1.msra.mxu0 %v371
          %400 = vmatprep.subr.mxu0 0.0
          %401 = vmatpush1.msra.mxu0 %v372
          %402 = vmatprep.subr.mxu0 0.0
          %403 = vmatpush1.msra.mxu0 %v373
          %404 = vmatprep.subr.mxu0 0.0
          %405 = vmatpush1.msra.mxu0 %v374
          %406 = vmatprep.subr.mxu0 0.0
          %407 = vmatpush1.msra.mxu0 %v375
          %408 = vmatprep.subr.mxu0 0.0
          %409 = vmatpush1.msra.mxu0 %v376
          %410 = vmatprep.subr.mxu0 0.0
          %411 = vmatpush1.msra.mxu0 %v377
          %412 = vmatprep.subr.mxu0 0.0
          %413 = vmatpush1.msra.mxu0 %v378
          %414 = vmatprep.subr.mxu0 0.0
          %415 = vmatpush1.msra.mxu0 %v379
          %416 = vmatprep.subr.mxu0 0.0
          %417 = vmatpush1.msra.mxu0 %v380
          %418 = vmatprep.subr.mxu0 0.0
          %419 = vmatpush1.msra.mxu0 %v381
          %420 = vmatprep.subr.mxu0 0.0
          %421 = vmatpush1.msra.mxu0 %v382
          %422 = vmatprep.subr.mxu0 0.0
          %423 = vmatpush1.msra.mxu0 0.0
          %424 = vmatprep.subr.mxu0 0.0
          %425 = vmatpush1.msra.mxu0 0.0
          %426 = vmatprep.subr.mxu0 0.0
          %427 = vmatpush1.msra.mxu0 0.0
          %428 = vmatprep.subr.mxu0 0.0
          %429 = vmatpush1.msra.mxu0 0.0
          %430 = vmatprep.subr.mxu0 0.0
          %431 = vmatpush1.msra.mxu0 0.0
          %432 = vmatprep.subr.mxu0 0.0
          %433 = vmatpush1.msra.mxu0 0.0
          %434 = vmatprep.subr.mxu0 0.0
          %435 = vmatpush1.msra.mxu0 0.0
          %436 = vmatprep.subr.mxu0 0.0
          %437 = vmatpush1.msra.mxu0 0.0
          %438 = vmatprep.subr.mxu0 0.0
          %439 = vmatpush1.msra.mxu0 0.0
          %440 = vmatprep.subr.mxu0 0.0
          %441 = vmatpush1.msra.mxu0 0.0
          %442 = vmatprep.subr.mxu0 0.0
          %443 = vmatpush1.msra.mxu0 0.0
          %444 = vmatprep.subr.mxu0 0.0
          %445 = vmatpush1.msra.mxu0 0.0
          %446 = vmatprep.subr.mxu0 0.0
          %447 = vmatpush1.msra.mxu0 0.0
          %448 = vmatprep.subr.mxu0 0.0
          %449 = vmatpush1.msra.mxu0 0.0
          %450 = vmatprep.subr.mxu0 0.0
          %451 = vmatpush1.msra.mxu0 0.0
          %452 = vmatprep.subr.mxu0 0.0
          %453 = vmatpush1.msra.mxu0 0.0
          %454 = vmatprep.mubr.f32.mxu0 0.0
          %455 = vmatmul.mubr.f32.gmra.mrb[0].mxu0 %v365
          %v456 = vpop.f32.mrb[0].mxu0
          %v457 = vadd.f32 %v388, %v456
          %v458 = vpop.f32.mrb[0].mxu0
          %459 = vmatprep.mubr.f32.mxu0 0.0
          %460 = vmatmul.mubr.f32.gmra.mrb[0].mxu0 %v366
          %v461 = vpop.f32.mrb[0].mxu0
          %v462 = vadd.f32 %v388, %v461
          %v463 = vpop.f32.mrb[0].mxu0
          %464 = vdwg.mxu0
          %v465 = vmul.f32 %v457, 0.5
          %v466 = vmul.f32 %v462, 0.5
          %v467 = vmul.f32 %v457, 0.70710677
          %v468 = vmul.f32 %v462, 0.70710677
          %v469 = verf.f32.pop %v467
          %v470 = verf.f32.pop %v468
          %v471 = vadd.f32 %v469, 1.0
          %v472 = vadd.f32 %v470, 1.0
          %v473 = vmul.f32 %v465, %v471
          %v474 = vmul.f32 %v466, %v472
          %475 = vadd.xlane.f32.xlu0 %v473
          %v476 = vpop.xlane.xlu0 %475
          %477 = vadd.xlane.f32.xlu0 %v474
          %v478 = vpop.xlane.xlu0 %477
          %v479 = vrcp.pop 128.0
          %v480 = vmul.f32 %v476, %v479
          %v481 = vmul.f32 %v478, %v479
          %v482 = vsub.f32 %v473, %v480
          %v483 = vsub.f32 %v474, %v481
          %v484 = vmul.f32 %v482, %v482
          %v485 = vmul.f32 %v483, %v483
          %486 = vadd.xlane.f32.xlu0 %v484
          %v487 = vpop.xlane.xlu0 %486
          %488 = vadd.xlane.f32.xlu0 %v485
          %v489 = vpop.xlane.xlu0 %488
          %v490 = vmul.f32 %v487, %v479
          %v491 = vmul.f32 %v489, %v479
          %v492 = vadd.f32 %v490, 1e-05
          %v493 = vadd.f32 %v491, 1e-05
          %v494 = vrsqrt.pop %v492
          %v495 = vrsqrt.pop %v493
          %v496 = vmul.f32 %v482, %v494
          %v497 = vmul.f32 %v483, %v495
          %v498 = vld [vmem:[%s3] sm:$0x1]
          %v500 = vlaneseq
          %v501 = vshrl.u32 %v500, 7
          %v502 = vsub.s32 0, %v501
          %v503 = vrot.slane %v498, %v502
          %v505 = vmul.f32 %v496, %v503
          %v506 = vmul.f32 %v497, %v503
          %v507 = vld [vmem:[%s4] sm:$0x1]
          %v509 = vlaneseq
          %v510 = vshrl.u32 %v509, 7
          %v511 = vsub.s32 0, %v510
          %v512 = vrot.slane %v507, %v511
          %v514 = vadd.f32 %v505, %v512
          %v515 = vadd.f32 %v506, %v512
          %516 = vst [vmem:[#allocation2] sm:$0xff] %v514
          %517 = vst [vmem:[#allocation2 + $0x8] sm:$0xff] %v515
        $region64: #{tpu_custom_call.1} parent=47 // pred_fallthru
          _
        %v518 = vld [vmem:[#allocation2] sm:$0xff]
        %v519 = vld [vmem:[#allocation2 + $0x8] sm:$0xff]
        %v520 = vld [vmem:[%s322] sm:$0xff]
        %v521 = vld [vmem:[%s322 + $0x8] sm:$0xff]
        %v522 = vld [vmem:[%s322 + $0x10] sm:$0xff]
        %v523 = vld [vmem:[%s322 + $0x18] sm:$0xff]
        %v524 = vld [vmem:[%s322 + $0x20] sm:$0xff]
        %v525 = vld [vmem:[%s322 + $0x28] sm:$0xff]
        %v526 = vld [vmem:[%s322 + $0x30] sm:$0xff]
        %v527 = vld [vmem:[%s322 + $0x38] sm:$0xff]
        %v528 = vld [vmem:[%s322 + $0x40] sm:$0xff]
        %v529 = vld [vmem:[%s322 + $0x48] sm:$0xff]
        %v530 = vld [vmem:[%s322 + $0x50] sm:$0xff]
        %v531 = vld [vmem:[%s322 + $0x58] sm:$0xff]
        %v532 = vld [vmem:[%s322 + $0x60] sm:$0xff]
        %v533 = vld [vmem:[%s322 + $0x68] sm:$0xff]
        %v534 = vld [vmem:[%s322 + $0x70] sm:$0xff]
        %v535 = vld [vmem:[%s322 + $0x78] sm:$0xff]
        %v536 = vld [vmem:[%s359] sm:$0x1]
        %v538 = vlaneseq
        %v539 = vshrl.u32 %v538, 7
        %v540 = vsub.s32 0, %v539
        %v541 = vrot.slane %v536, %v540
        %543 = vmatprep.subr.mxu0 0.0
        %544 = vmatpush1.msra.mxu0 %v520
        %545 = vmatprep.subr.mxu0 0.0
        %546 = vmatpush1.msra.mxu0 %v521
        %547 = vmatprep.subr.mxu0 0.0
        %548 = vmatpush1.msra.mxu0 %v522
        %549 = vmatprep.subr.mxu0 0.0
        %550 = vmatpush1.msra.mxu0 %v523
        %551 = vmatprep.subr.mxu0 0.0
        %552 = vmatpush1.msra.mxu0 %v524
        %553 = vmatprep.subr.mxu0 0.0
        %554 = vmatpush1.msra.mxu0 %v525
        %555 = vmatprep.subr.mxu0 0.0
        %556 = vmatpush1.msra.mxu0 %v526
        %557 = vmatprep.subr.mxu0 0.0
        %558 = vmatpush1.msra.mxu0 %v527
        %559 = vmatprep.subr.mxu0 0.0
        %560 = vmatpush1.msra.mxu0 %v528
        %561 = vmatprep.subr.mxu0 0.0
        %562 = vmatpush1.msra.mxu0 %v529
        %563 = vmatprep.subr.mxu0 0.0
        %564 = vmatpush1.msra.mxu0 %v530
        %565 = vmatprep.subr.mxu0 0.0
        %566 = vmatpush1.msra.mxu0 %v531
        %567 = vmatprep.subr.mxu0 0.0
        %568 = vmatpush1.msra.mxu0 %v532
        %569 = vmatprep.subr.mxu0 0.0
        %570 = vmatpush1.msra.mxu0 %v533
        %571 = vmatprep.subr.mxu0 0.0
        %572 = vmatpush1.msra.mxu0 %v534
        %573 = vmatprep.subr.mxu0 0.0
        %574 = vmatpush1.msra.mxu0 %v535
        %575 = vmatprep.subr.mxu0 0.0
        %576 = vmatpush1.msra.mxu0 0.0
        %577 = vmatprep.subr.mxu0 0.0
        %578 = vmatpush1.msra.mxu0 0.0
        %579 = vmatprep.subr.mxu0 0.0
        %580 = vmatpush1.msra.mxu0 0.0
        %581 = vmatprep.subr.mxu0 0.0
        %582 = vmatpush1.msra.mxu0 0.0
        %583 = vmatprep.subr.mxu0 0.0
        %584 = vmatpush1.msra.mxu0 0.0
        %585 = vmatprep.subr.mxu0 0.0
        %586 = vmatpush1.msra.mxu0 0.0
        %587 = vmatprep.subr.mxu0 0.0
        %588 = vmatpush1.msra.mxu0 0.0
        %589 = vmatprep.subr.mxu0 0.0
        %590 = vmatpush1.msra.mxu0 0.0
        %591 = vmatprep.subr.mxu0 0.0
        %592 = vmatpush1.msra.mxu0 0.0
        %593 = vmatprep.subr.mxu0 0.0
        %594 = vmatpush1.msra.mxu0 0.0
        %595 = vmatprep.subr.mxu0 0.0
        %596 = vmatpush1.msra.mxu0 0.0
        %597 = vmatprep.subr.mxu0 0.0
        %598 = vmatpush1.msra.mxu0 0.0
        %599 = vmatprep.subr.mxu0 0.0
        %600 = vmatpush1.msra.mxu0 0.0
        %601 = vmatprep.subr.mxu0 0.0
        %602 = vmatpush1.msra.mxu0 0.0
        %603 = vmatprep.subr.mxu0 0.0
        %604 = vmatpush1.msra.mxu0 0.0
        %605 = vmatprep.subr.mxu0 0.0
        %606 = vmatpush1.msra.mxu0 0.0
        %607 = vmatprep.mubr.f32.mxu0 0.0
        %608 = vmatmul.mubr.f32.gmra.mrb[0].mxu0 %v518
        %v609 = vpop.f32.mrb[0].mxu0
        %v610 = vadd.f32 %v541, %v609
        %v611 = vpop.f32.mrb[0].mxu0
        %612 = vmatprep.mubr.f32.mxu0 0.0
        %613 = vmatmul.mubr.f32.gmra.mrb[0].mxu0 %v519
        %v614 = vpop.f32.mrb[0].mxu0
        %v615 = vadd.f32 %v541, %v614
        %v616 = vpop.f32.mrb[0].mxu0
        %617 = vdwg.mxu0
        %618 = vst [vmem:[%s355] sm:$0xff] %v610
        %619 = vst [vmem:[%s355 + $0x8] sm:$0xff] %v615
        %s620 = sand.u32 %s207, 1
        %s621 = scalar_lea.sflag [#allocation5], %s620
        %s622 = sand.u32 %s207, 1
        %s623 = smul.addr %s622, 16
        %s624 = scalar_lea.vmem [#allocation9], %s623
        // Predicated region
        $region65: #{tpu_custom_call.1} parent=47 // pred_check
          %p625 = pneg %p217
        $region66: #{tpu_custom_call.1} parent=47 // pred_check_branch
          %627 = sbr.rel (%p625) target = $region68
        $region67: #{tpu_custom_call.1} parent=47 // pred_region
          %s628 = smul.u32 2, %s27
          %s630 = ssub.s32 256, 256
          %631 = vsyncadd %s621, %s630
          %s632 = smul.addr %s628, 2
          %s633 = sadd.s32 %s28, %s632
          %s634 = smul.addr %s633, 128
          %s635 = scalar_lea.hbm %s7, %s634
          %s636 = sshll.u32 %s624, 4
          %s637 = int_to_ptr.vmem [resolvable:$true] %s636
          %642 = dma.vmem_to_hbm [thread:$0]  %s637, 256, %s635, %s621, 128, 256, 8
        $region68: #{tpu_custom_call.1} parent=47 // pred_fallthru
          _
      $region48: #{tpu_custom_call.1} parent=5 // pred_fallthru
        _
      %p643 = scmp.le.s32.totalorder 2, %s18
      // Predicated region
      $region69: #{tpu_custom_call.1} parent=5 // pred_check
        %p644 = pneg %p643
      $region70: #{tpu_custom_call.1} parent=5 // pred_check_branch
        %646 = sbr.rel (%p644) target = $region72
      $region71: #{tpu_custom_call.1} parent=5 // pred_region
        %s647 = ssub.s32 %s18, 2
        // Predicated region
        $region73: #{tpu_custom_call.1} parent=71 // pred_check
          %p648 = pneg %p223
        $region74: #{tpu_custom_call.1} parent=71 // pred_check_branch
          %650 = sbr.rel (%p648) target = $region76
        $region75: #{tpu_custom_call.1} parent=71 // pred_region
          %s651 = sand.u32 %s208, 1
          %s652 = scalar_lea.sflag [#allocation5], %s651
          %s653 = sand.u32 %s208, 1
          %s654 = smul.addr %s653, 16
          %s655 = scalar_lea.vmem [#allocation9], %s654
          %656 = dma.done %s652, 256
        $region76: #{tpu_custom_call.1} parent=71 // pred_fallthru
          _
      $region72: #{tpu_custom_call.1} parent=5 // pred_fallthru
        _
    $region6: #{tpu_custom_call.1} parent=1 // loop_footer
      %s22 = sadd.s32 1, %s18
    $region7: #{tpu_custom_call.1} parent=1 // loop_footer_branch
      %17 = sbr.rel target = $region3
    $region8: #{tpu_custom_call.1} parent=1 // loop_exit
      _
    %657 = vsyncpa [#allocation4], 1
    %s658 = scalar_lea.sflag [#allocation4], 1
    %659 = vsyncpa %s658, 1
    %660 = vsyncpa [#allocation7], 1
    %661 = vsyncpa [#allocation5], 1
    %s662 = scalar_lea.sflag [#allocation5], 1
    %663 = vsyncpa %s662, 1

</llo_original>
